<compile_context>
chip_gen: v5e
topology: v5e:2x2
jax: 0.10.0
libtpu: 0.0.40
codegen_flags: <defaults>
</compile_context>

<pallas_src>
import functools
import math

import jax
import jax.numpy as jnp
from jax import lax
from jax.experimental import pallas as pl
from jax.experimental.pallas import tpu as pltpu


def _nbytes(a):
    return int(a.size) * a.dtype.itemsize


def _mosaic_params(vmem_bytes, dims=None):
    # TODO(synk): on v7x (64 MiB physical VMEM) cap near 48 MiB and stream the
    # embedding table / LM head from HBM (pl.ANY) with a vocab-tiled softmax.
    vmem_bytes = int(max(min(vmem_bytes, 100 << 20), 4 << 20))
    if dims is None:
        return pltpu.CompilerParams(vmem_limit_bytes=vmem_bytes)
    return pltpu.CompilerParams(vmem_limit_bytes=vmem_bytes,
                                dimension_semantics=dims)


# -------------------- embedding + positional encoding kernel ------------------

def embed_kernel(ids_ref, emb_ref, pos_ref, out_ref, *, scale):
    """out[t] = emb[ids[t]] * sqrt(d_model) + pos[t]."""
    bs = out_ref.shape[0]

    def gather_row(t, carry):
        idx = ids_ref[t]
        out_ref[pl.ds(t, 1), :] = emb_ref[pl.ds(idx, 1), :]
        return carry

    # TODO(synk): for large vocabularies keep `emb` in HBM (pl.ANY) and issue
    # double-buffered make_async_copy row fetches instead of a VMEM table.
    lax.fori_loop(0, bs, gather_row, 0)
    out_ref[...] = out_ref[...] * scale + pos_ref[...]


# --------------------------- per-layer decoder kernel -------------------------

def _layer_norm(x, g, b, eps=1e-5):
    # x: (N, D) f32, g/b: (1, D) f32 -- stats kept in f32 (v5e has no bf16 VPU)
    mu = jnp.mean(x, axis=-1, keepdims=True)
    var = jnp.mean((x - mu) ** 2, axis=-1, keepdims=True)
    return (x - mu) * lax.rsqrt(var + eps) * g + b


def _swap_leading_sublane(t):
    # (a, b, d) -> (b, a, d), keeping the minor (lane) dim in place.
    if hasattr(pltpu, "einshape"):
        return pltpu.einshape("abd->bad", t)
    return jnp.transpose(t, (1, 0, 2))


def decoder_layer_kernel(
    x0_ref, mem_ref, mask_ref,
    ln1_g_ref, ln1_b_ref, s_wqkv_ref, s_bqkv_ref, s_wo_ref, s_bo_ref,
    ln2_g_ref, ln2_b_ref, c_wq_ref, c_bq_ref, c_wkv_ref, c_bkv_ref,
    c_wo_ref, c_bo_ref,
    ln3_g_ref, ln3_b_ref, mlp_w1_ref, mlp_b1_ref, mlp_w2_ref, mlp_b2_ref,
    x_ref,
    *, num_heads, batch):
    layer = pl.program_id(0)

    # residual stream lives in the resident output block across the depth grid
    @pl.when(layer == 0)
    def _():
        x_ref[...] = x0_ref[...]

    bs, d_model = x_ref.shape
    seq_len = bs // batch
    n_mem = mem_ref.shape[0] // batch
    H = num_heads
    hd = d_model // H
    scale = 1.0 / math.sqrt(hd)

    x = x_ref[...]                # (B*S, D) f32
    mask = mask_ref[...]          # (S, S) additive

    def split_heads(t, n_rows):
        # (B*n_rows, H*hd) bf16 -> (H*B, n_rows, hd)
        t = t.reshape(batch * n_rows, H, hd)
        t = _swap_leading_sublane(t)              # (H, B*n_rows, hd)
        return t.reshape(H * batch, n_rows, hd)

    def merge_heads(t):
        # (H*B, S, hd) bf16 -> (B*S, H*hd)
        t = t.reshape(H, batch * seq_len, hd)
        t = _swap_leading_sublane(t)              # (B*S, H, hd)
        return t.reshape(batch * seq_len, H * hd)

    def attention(q, k, v, n_kv, add_mask):
        # q: (B*S, D) f32 ; k, v: (B*n_kv, D) f32
        qh = split_heads(q.astype(jnp.bfloat16), seq_len)
        kh = split_heads(k.astype(jnp.bfloat16), n_kv)
        vh = split_heads(v.astype(jnp.bfloat16), n_kv)
        s = jnp.einsum('nqd,nkd->nqk', qh, kh,
                       preferred_element_type=jnp.float32) * scale
        if add_mask is not None:
            s = s + add_mask[None]
        s = s - jnp.max(s, axis=-1, keepdims=True)
        p = jnp.exp(s)
        p = p * pl.reciprocal(jnp.sum(p, axis=-1, keepdims=True), approx=True)
        o = jnp.einsum('nqk,nkd->nqd', p.astype(jnp.bfloat16), vh,
                       preferred_element_type=jnp.float32)
        return merge_heads(o.astype(jnp.bfloat16))   # (B*S, D) bf16

    # --- masked self-attention (pre-norm), fused (D,3D) QKV projection -------
    h1 = _layer_norm(x, ln1_g_ref[...], ln1_b_ref[...])
    qkv = jnp.dot(h1.astype(jnp.bfloat16), s_wqkv_ref[...],
                  preferred_element_type=jnp.float32) + s_bqkv_ref[...]
    ctx = attention(qkv[:, :d_model], qkv[:, d_model:2 * d_model],
                    qkv[:, 2 * d_model:], seq_len, mask)
    x = x + jnp.dot(ctx, s_wo_ref[...],
                    preferred_element_type=jnp.float32) + s_bo_ref[...]

    # --- cross-attention to memory (memory_mask is None), fused (D,2D) KV ----
    h2 = _layer_norm(x, ln2_g_ref[...], ln2_b_ref[...])
    q = jnp.dot(h2.astype(jnp.bfloat16), c_wq_ref[...],
                preferred_element_type=jnp.float32) + c_bq_ref[...]
    kv = jnp.dot(mem_ref[...], c_wkv_ref[...],
                 preferred_element_type=jnp.float32) + c_bkv_ref[...]
    ctx = attention(q, kv[:, :d_model], kv[:, d_model:], n_mem, None)
    x = x + jnp.dot(ctx, c_wo_ref[...],
                    preferred_element_type=jnp.float32) + c_bo_ref[...]

    # --- MLP ------------------------------------------------------------------
    h3 = _layer_norm(x, ln3_g_ref[...], ln3_b_ref[...])
    hmid = jnp.dot(h3.astype(jnp.bfloat16), mlp_w1_ref[...],
                   preferred_element_type=jnp.float32) + mlp_b1_ref[...]
    # TODO(synk): PyTorch nn.GELU defaults to exact erf; tanh approximation here.
    hmid = jax.nn.gelu(hmid, approximate=True)
    x = x + jnp.dot(hmid.astype(jnp.bfloat16), mlp_w2_ref[...],
                    preferred_element_type=jnp.float32) + mlp_b2_ref[...]

    x_ref[...] = x


# -------------------------------- LM head kernel ------------------------------

def lm_head_kernel(x_ref, w_ref, b_ref, out_ref):
    logits = jnp.dot(x_ref[...].astype(jnp.bfloat16), w_ref[...],
                     preferred_element_type=jnp.float32) + b_ref[...]
    logits = logits - jnp.max(logits, axis=-1, keepdims=True)
    p = jnp.exp(logits)
    # per-row reciprocal broadcast-multiplied instead of a full-width divide
    out_ref[...] = p * pl.reciprocal(jnp.sum(p, axis=-1, keepdims=True),
                                     approx=False)


# ----------------------------------- wrapper ----------------------------------

def unimodal_caption_decoder(ids, memory, tgt_mask, params, *, depth, num_heads):
    """ids: (B, S, 1) int32 token ids, memory: (B, T, D), tgt_mask: (S, S)
    additive float mask (0 allowed / -1e9 masked).
    Returns (1, B, S, vocab) float32 (return_intermediate=False)."""
    batch, seq_len = ids.shape[0], ids.shape[1]
    _, num_tokens, d_model = memory.shape
    vocab = params["emb"].shape[0]
    bs = batch * seq_len
    vpad = ((vocab + 127) // 128) * 128
    bf = jnp.bfloat16

    vmem = pl.BlockSpec(memory_space=pltpu.MemorySpace.VMEM)
    smem = pl.BlockSpec(memory_space=pltpu.MemorySpace.SMEM)

    # sinusoidal positional encoding (non-learned buffer), tiled over batch
    position = jnp.arange(seq_len, dtype=jnp.float32)[:, None]
    div_term = jnp.exp(jnp.arange(0, d_model, 2, dtype=jnp.float32)
                       * (-math.log(10000.0) / d_model))
    pe = jnp.zeros((seq_len, d_model), jnp.float32)
    pe = pe.at[:, 0::2].set(jnp.sin(position * div_term))
    pe = pe.at[:, 1::2].set(jnp.cos(position * div_term))
    pos = jnp.tile(pe, (batch, 1))                                  # (B*S, D)

    # ---- 1) embedding gather + scale + positional encoding -------------------
    ids_flat = ids.reshape(bs).astype(jnp.int32)
    emb = params["emb"].astype(jnp.float32)
    x0 = pl.pallas_call(
        functools.partial(embed_kernel, scale=math.sqrt(d_model)),
        out_shape=jax.ShapeDtypeStruct((bs, d_model), jnp.float32),
        in_specs=[smem, vmem, vmem],
        out_specs=vmem,
        compiler_params=_mosaic_params(
            4 * (_nbytes(emb) + _nbytes(pos)) + (4 << 20)),
    )(ids_flat, emb, pos)

    # ---- 2) decoder stack: grid over depth, per-layer weights streamed -------
    mem_flat = memory.reshape(batch * num_tokens, d_model).astype(bf)
    mask_f = tgt_mask.astype(jnp.float32)

    # wrapper-side (free) weight fusion: QKV fused to (D,3D), memory KV to (D,2D)
    s_wqkv = jnp.concatenate([params["sq_w"], params["sk_w"], params["sv_w"]],
                             axis=-1).astype(bf)
    s_bqkv = jnp.concatenate([params["sq_b"], params["sk_b"], params["sv_b"]],
                             axis=-1).astype(jnp.float32)
    c_wkv = jnp.concatenate([params["ck_w"], params["cv_w"]],
                            axis=-1).astype(bf)
    c_bkv = jnp.concatenate([params["ck_b"], params["cv_b"]],
                            axis=-1).astype(jnp.float32)

    layer_ops = [
        params["ln1_g"], params["ln1_b"],
        s_wqkv, s_bqkv, params["so_w"].astype(bf), params["so_b"],
        params["ln2_g"], params["ln2_b"],
        params["cq_w"].astype(bf), params["cq_b"], c_wkv, c_bkv,
        params["co_w"].astype(bf), params["co_b"],
        params["ln3_g"], params["ln3_b"],
        params["mlp_w1"].astype(bf), params["mlp_b1"],
        params["mlp_w2"].astype(bf), params["mlp_b2"],
    ]

    def layer_spec(arr):   # stream one layer's slab per grid step
        return pl.BlockSpec((None,) + tuple(arr.shape[1:]), lambda l: (l, 0, 0))

    dec_in_specs = (
        [pl.BlockSpec((bs, d_model), lambda l: (0, 0)),
         pl.BlockSpec((batch * num_tokens, d_model), lambda l: (0, 0)),
         pl.BlockSpec((seq_len, seq_len), lambda l: (0, 0))]
        + [layer_spec(a) for a in layer_ops])

    resident = (_nbytes(x0) + _nbytes(mem_flat) + _nbytes(mask_f)
                + bs * d_model * 4)
    per_layer = sum(_nbytes(a) // depth for a in layer_ops)
    x_final = pl.pallas_call(
        functools.partial(decoder_layer_kernel,
                          num_heads=num_heads, batch=batch),
        grid=(depth,),
        out_shape=jax.ShapeDtypeStruct((bs, d_model), jnp.float32),
        in_specs=dec_in_specs,
        out_specs=pl.BlockSpec((bs, d_model), lambda l: (0, 0)),
        compiler_params=_mosaic_params(
            4 * resident + 2 * per_layer + (8 << 20), dims=("arbitrary",)),
    )(x0, mem_flat, mask_f, *layer_ops)

    # ---- 3) LM head + softmax over the lane-padded vocab ---------------------
    # padded logits carry a -1e9 bias so they contribute exactly 0 to the sum
    head_w = jnp.zeros((d_model, vpad), jnp.float32)
    head_w = head_w.at[:, :vocab].set(params["head_w"]).astype(bf)
    head_b = jnp.full((1, vpad), -1e9, jnp.float32)
    head_b = head_b.at[:, :vocab].set(params["head_b"])
    # TODO(synk): for realistic vocab sizes tile the head over vocab blocks with
    # an online softmax (keeps head_w and the output slab out of resident VMEM).
    probs = pl.pallas_call(
        lm_head_kernel,
        out_shape=jax.ShapeDtypeStruct((bs, vpad), jnp.float32),
        in_specs=[vmem, vmem, vmem],
        out_specs=vmem,
        compiler_params=_mosaic_params(
            4 * (_nbytes(head_w) + _nbytes(head_b) + _nbytes(x_final))
            + 2 * bs * vpad * 4 + (4 << 20)),
    )(x_final, head_w, head_b)

    probs = probs[:, :vocab].reshape(batch, seq_len, vocab)
    return probs[None]   # (1, B, S, vocab); return_intermediate=False


# ------------------------------------ main ------------------------------------

if __name__ == "__main__":
    # small shapes consistent with the module's forward
    B, S, T = 2, 8, 16          # batch, caption seq_len, num memory tokens
    D, V = 32, 64               # d_model, vocab_size
    DEPTH, HEADS = 2, 4
    HID = int(4.0 * D)          # mlp_ratio = 4.0

    key = jax.random.PRNGKey(0)
    keys = iter(jax.random.split(key, 64))

    def nrm(shape, scale=0.02):
        return (scale * jax.random.normal(next(keys), shape)).astype(jnp.float32)

    params = {
        "emb": nrm((V, D)),
        "ln1_g": jnp.ones((DEPTH, 1, D), jnp.float32),
        "ln1_b": jnp.zeros((DEPTH, 1, D), jnp.float32),
        "sq_w": nrm((DEPTH, D, D)), "sq_b": jnp.zeros((DEPTH, 1, D), jnp.float32),
        "sk_w": nrm((DEPTH, D, D)), "sk_b": jnp.zeros((DEPTH, 1, D), jnp.float32),
        "sv_w": nrm((DEPTH, D, D)), "sv_b": jnp.zeros((DEPTH, 1, D), jnp.float32),
        "so_w": nrm((DEPTH, D, D)), "so_b": jnp.zeros((DEPTH, 1, D), jnp.float32),
        "ln2_g": jnp.ones((DEPTH, 1, D), jnp.float32),
        "ln2_b": jnp.zeros((DEPTH, 1, D), jnp.float32),
        "cq_w": nrm((DEPTH, D, D)), "cq_b": jnp.zeros((DEPTH, 1, D), jnp.float32),
        "ck_w": nrm((DEPTH, D, D)), "ck_b": jnp.zeros((DEPTH, 1, D), jnp.float32),
        "cv_w": nrm((DEPTH, D, D)), "cv_b": jnp.zeros((DEPTH, 1, D), jnp.float32),
        "co_w": nrm((DEPTH, D, D)), "co_b": jnp.zeros((DEPTH, 1, D), jnp.float32),
        "ln3_g": jnp.ones((DEPTH, 1, D), jnp.float32),
        "ln3_b": jnp.zeros((DEPTH, 1, D), jnp.float32),
        "mlp_w1": nrm((DEPTH, D, HID)),
        "mlp_b1": jnp.zeros((DEPTH, 1, HID), jnp.float32),
        "mlp_w2": nrm((DEPTH, HID, D)),
        "mlp_b2": jnp.zeros((DEPTH, 1, D), jnp.float32),
        "head_w": nrm((D, V)), "head_b": jnp.zeros((1, V), jnp.float32),
    }

    # deterministic example inputs
    ids = jax.random.randint(next(keys), (B, S, 1), 0, V, dtype=jnp.int32)
    memory = jax.random.normal(next(keys), (B, T, D), dtype=jnp.float32)
    # causal (look-ahead) target mask, additive: 0 allowed / -1e9 masked
    causal = jnp.tril(jnp.ones((S, S), jnp.bool_))
    tgt_mask = jnp.where(causal, 0.0, -1e9).astype(jnp.float32)

    out = unimodal_caption_decoder(ids, memory, tgt_mask, params,
                                   depth=DEPTH, num_heads=HEADS)
    out = jax.block_until_ready(out)

    assert out.shape == (1, B, S, V)
    assert bool(jnp.all(jnp.isfinite(out)))
    # softmax rows should sum to ~1
    assert bool(jnp.allclose(jnp.sum(out, axis=-1), 1.0, atol=1e-4))
    print("KERNEL_OK")
</pallas_src>

<mosaic_0001>
module attributes {stable_mosaic.version = 11 : i64} {
  func.func @embed_kernel(%arg0: memref<16xi32, #tpu.memory_space<smem>>, %arg1: memref<64x32xf32, #tpu.memory_space<vmem>>, %arg2: memref<16x32xf32, #tpu.memory_space<vmem>>, %arg3: memref<16x32xf32, #tpu.memory_space<vmem>>) attributes {dimension_semantics = [], scalar_prefetch = 0 : i64, scratch_operands = 0 : i64, tpu.core_type = #tpu.core_type<tc>} {
    %c0_i32 = arith.constant 0 : i32
    %c16_i32 = arith.constant 16 : i32
    %0 = arith.addi %c0_i32, %c16_i32 : i32
    %c1_i32 = arith.constant 1 : i32
    scf.for %arg4 = %c0_i32 to %0 step %c1_i32  : i32 {
      %7 = arith.index_cast %arg4 : i32 to index
      %8 = memref.load %arg0[%7] : memref<16xi32, #tpu.memory_space<smem>>
      %9 = arith.index_cast %8 : i32 to index
      %c0_6 = arith.constant 0 : index
      %10 = vector.load %arg1[%9, %c0_6] : memref<64x32xf32, #tpu.memory_space<vmem>>, vector<1x32xf32>
      %11 = arith.index_cast %arg4 : i32 to index
      %c0_7 = arith.constant 0 : index
      %12 = vector.load %arg3[%11, %c0_7] : memref<16x32xf32, #tpu.memory_space<vmem>>, vector<1x32xf32>
      tpu.vector_store %arg3[%11, %c0_7], %10 {strides = array<i32>} : memref<16x32xf32, #tpu.memory_space<vmem>>, vector<1x32xf32>,
    }
    %c16_i32_0 = arith.constant 16 : i32
    %c0 = arith.constant 0 : index
    %c0_1 = arith.constant 0 : index
    %1 = vector.load %arg3[%c0, %c0_1] : memref<16x32xf32, #tpu.memory_space<vmem>>, vector<16x32xf32>
    %cst = arith.constant 5.65685415 : f32
    %2 = vector.broadcast %cst : f32 to vector<16x32xf32>
    %3 = arith.mulf %1, %2 : vector<16x32xf32>
    %c0_2 = arith.constant 0 : index
    %c0_3 = arith.constant 0 : index
    %4 = vector.load %arg2[%c0_2, %c0_3] : memref<16x32xf32, #tpu.memory_space<vmem>>, vector<16x32xf32>
    %5 = arith.addf %3, %4 : vector<16x32xf32>
    %c0_4 = arith.constant 0 : index
    %c0_5 = arith.constant 0 : index
    %6 = vector.load %arg3[%c0_4, %c0_5] : memref<16x32xf32, #tpu.memory_space<vmem>>, vector<16x32xf32>
    tpu.vector_store %arg3[%c0_4, %c0_5], %5 {strides = array<i32>} : memref<16x32xf32, #tpu.memory_space<vmem>>, vector<16x32xf32>,
    return
  }
}

</mosaic_0001>

<llo_original>
// kernel: tpu_custom_call.1
$region0: #{tpu_custom_call.1}
  #allocation0 [shape = 'u32[]', space=smem, size = 0x4, offset = 0x4, fixed_abs, tag = 'smem constant byte address 0x4 - core index']
  #allocation1 [shape = 'u32[72,128]{1,0:T(1,128)}', space=vmem, size = 0x9000, scoped, tag = 'internal scratch']
  %s0 = inlined_call_operand.vmem [shape: s32[16], index: 0, kind: input, shape index: {}]
  %s1 = inlined_call_operand.vmem [shape: f32[64,32], index: 1, kind: input, shape index: {}]
  %s2 = inlined_call_operand.vmem [shape: f32[16,32], index: 2, kind: input, shape index: {}]
  %s3 = inlined_call_operand.hbm [shape: f32[16,32], index: 3, kind: output, shape index: {}]
  %s4 = sld [smem:[#allocation0]]
  $region33: #{tpu_custom_call.1} parent=0
    _
  %s6 = ssub.s32 1, %s4
  %s7 = scalar_select 0, %s6, %s4
  $region1: #{tpu_custom_call.1} parent=0
    #allocation2 [shape = 'u8[512]{0}', space=smem, size = 0x200, scoped, tag = 'input window, operand 0, single buffered']
    #allocation3 [shape = 's32[1]{0}', space=sflag, size = 0x4, scoped, tag = 'scoped memory for tpu_custom_call.1']
    #allocation4 [shape = 's32[1]{0}', space=sflag, size = 0x4, scoped, tag = 'scoped memory for tpu_custom_call.1']
    #allocation5 [shape = 'u8[8192]{0}', space=vmem, size = 0x2000, scoped, tag = 'output window, operand 0, single buffered']
    %8 = vsyncpa [#allocation4], 0
    %9 = vsyncpa [#allocation3], 0
    // Predicated region
    $region2: #{tpu_custom_call.1} parent=1 // pred_check
      _
    $region3: #{tpu_custom_call.1} parent=1 // pred_check_branch
      %11 = sbr.rel (0) target = $region5
    $region4: #{tpu_custom_call.1} parent=1 // pred_region
      %13 = vsyncadd [#allocation4], 0
      %s15 = sshll.u32 %s0, 4
      %s16 = int_to_ptr.vmem [resolvable:$true] %s15
      %18 = dma.vmem_to_smem %s16, 16, [#allocation2], [#allocation4]
    $region5: #{tpu_custom_call.1} parent=1 // pred_fallthru
      _
    // Predicated region
    $region6: #{tpu_custom_call.1} parent=1 // pred_check
      _
    $region7: #{tpu_custom_call.1} parent=1 // pred_check_branch
      %20 = sbr.rel (0) target = $region9
    $region8: #{tpu_custom_call.1} parent=1 // pred_region
      _
    $region9: #{tpu_custom_call.1} parent=1 // pred_fallthru
      _
    // Predicated region
    $region10: #{tpu_custom_call.1} parent=1 // pred_check
      _
    $region11: #{tpu_custom_call.1} parent=1 // pred_check_branch
      %22 = sbr.rel (0) target = $region13
    $region12: #{tpu_custom_call.1} parent=1 // pred_region
      _
    $region13: #{tpu_custom_call.1} parent=1 // pred_fallthru
      _
    // Predicated region
    $region14: #{tpu_custom_call.1} parent=1 // pred_check
      _
    $region15: #{tpu_custom_call.1} parent=1 // pred_check_branch
      %24 = sbr.rel (0) target = $region17
    $region16: #{tpu_custom_call.1} parent=1 // pred_region
      %26 = dma.done [#allocation4], 16
    $region17: #{tpu_custom_call.1} parent=1 // pred_fallthru
      _
    %27 = sfence
    loop: start=0, step=1, limit=16
    $region18: #{tpu_custom_call.1} parent=1 // loop_pre_header
      _
    $region19: #{tpu_custom_call.1} parent=1 // loop_header
      %s29 = sphi 0, %s33
      %p30 = scmp.ge.s32.totalorder %s29, 16
    $region20: #{tpu_custom_call.1} parent=1 // loop_header_branch
      %32 = sbr.rel (%p30) target = $region24
    $region21: #{tpu_custom_call.1} parent=1 // loop_body
      %s34 = sld [smem:[#allocation2 + %s29]]
      %s35 = scalar_lea.vmem %s1, %s34
      %v36 = vld [vmem:[%s35] sm:$0x1]
      %s37 = scalar_lea.vmem [#allocation5], %s29
      %vm38 = vcmask 253952
      %39 = vst.msk [vmem:[%s37] sm:$0x1] %vm38, %v36
    $region22: #{tpu_custom_call.1} parent=1 // loop_footer
      %s33 = sadd.s32 1, %s29
    $region23: #{tpu_custom_call.1} parent=1 // loop_footer_branch
      %28 = sbr.rel target = $region19
    $region24: #{tpu_custom_call.1} parent=1 // loop_exit
      _
    %v40 = vld [vmem:[#allocation5] sm:$0xff]
    %v41 = vld [vmem:[#allocation5 + $0x8] sm:$0xff]
    %v42 = vmul.f32 %v40, 5.656854
    %v43 = vmul.f32 %v41, 5.656854
    %v44 = vld [vmem:[%s2] sm:$0xff]
    %v45 = vld [vmem:[%s2 + $0x8] sm:$0xff]
    %v46 = vadd.f32 %v42, %v44
    %v47 = vadd.f32 %v43, %v45
    %vm48 = vcmask 261120
    %49 = vst.msk [vmem:[#allocation5] sm:$0xff] %vm48, %v46
    %50 = vst.msk [vmem:[#allocation5 + $0x8] sm:$0xff] %vm48, %v47
    // Predicated region
    $region25: #{tpu_custom_call.1} parent=1 // pred_check
      _
    $region26: #{tpu_custom_call.1} parent=1 // pred_check_branch
      %52 = sbr.rel (0) target = $region28
    $region27: #{tpu_custom_call.1} parent=1 // pred_region
      %54 = vsyncadd [#allocation3], 0
      %s55 = sshll.u32 [#allocation5], 4
      %s56 = int_to_ptr.vmem [resolvable:$true] %s55
      %s57 = sshll.u32 %s3, 4
      %s58 = int_to_ptr.hbm [resolvable:$true] %s57
      %63 = dma.vmem_to_hbm [thread:$0]  %s56, 256, %s58, [#allocation3], 128, 128, 8
    $region28: #{tpu_custom_call.1} parent=1 // pred_fallthru
      _
    // Predicated region
    $region29: #{tpu_custom_call.1} parent=1 // pred_check
      _
    $region30: #{tpu_custom_call.1} parent=1 // pred_check_branch
      %65 = sbr.rel (0) target = $region32
    $region31: #{tpu_custom_call.1} parent=1 // pred_region
      %67 = dma.done [#allocation3], 256
    $region32: #{tpu_custom_call.1} parent=1 // pred_fallthru
      _
    %68 = vsyncpa [#allocation3], 1
    %69 = vsyncpa [#allocation4], 1

</llo_original>
